<compile_context>
chip_gen: v7x
topology: tpu7x:2x2x1
jax: 0.10.0
libtpu: 0.0.40
codegen_flags: <defaults>
</compile_context>

<pallas_src>
import jax
import jax.numpy as jnp
import numpy as np
from jax.experimental import pallas as pl
from jax.experimental.pallas import tpu as pltpu


def _one_hot_encoder_kernel(i_ref, m_hbm, out_ref, sem):
    # i_ref  : (1,) int32 in SMEM (scalar prefetch), already reduced mod time_num
    # m_hbm  : (time_num + T, E) f32 raw HBM ref (memory_space=pl.ANY) == [I @ W.T + b ; first T rows]
    # out_ref: (T, E) f32 VMEM output block
    # sem    : DMA completion semaphore
    T = out_ref.shape[0]
    i0 = i_ref[0]
    # The gather (i0 + t) mod time_num is a contiguous window of the padded matrix, so the
    # whole op is one strided HBM->VMEM DMA straight into the output block.
    cp = pltpu.make_async_copy(m_hbm.at[pl.ds(i0, T), :], out_ref, sem)
    cp.start()
    cp.wait()


def one_hot_encoder_forward(i, I, W, b, N=25, T=12):
    """Forward of One_hot_encoder: returns (N, T, embed_size)."""
    time_num = I.shape[0]
    embed_size = W.shape[0]

    # Fold the learned I and the bias into a single matrix (exact w.r.t. the gather since
    # each output row selects exactly one row).  HIGHEST precision keeps f32 parity with
    # PyTorch for a trained, non-identity I.  Cacheable per weight update.
    M = jnp.dot(
        I.astype(jnp.float32),
        W.astype(jnp.float32).T,
        preferred_element_type=jnp.float32,
        precision=jax.lax.Precision.HIGHEST,
    ) + b.astype(jnp.float32)[None, :]                       # (time_num, E)

    # Pad with the first T rows so the wraparound becomes a contiguous slice.
    M_pad = jnp.concatenate([M, M[:T]], axis=0)              # (time_num + T, E)

    # Scalar prefetch: slot index lands in SMEM before the grid runs.
    i_arr = (jnp.asarray(i, dtype=jnp.int32) % time_num).reshape(1)

    grid_spec = pltpu.PrefetchScalarGridSpec(
        num_scalar_prefetch=1,
        grid=(1,),
        in_specs=[
            pl.BlockSpec(memory_space=pl.ANY),               # M_pad stays in HBM, manual DMA
        ],
        out_specs=pl.BlockSpec((T, embed_size), lambda g, i_ref: (0, 0)),
        scratch_shapes=[pltpu.SemaphoreType.DMA(())],
    )

    out_te = pl.pallas_call(
        _one_hot_encoder_kernel,
        out_shape=jax.ShapeDtypeStruct((T, embed_size), jnp.float32),
        grid_spec=grid_spec,
        compiler_params=pltpu.CompilerParams(dimension_semantics=("arbitrary",)),
    )(i_arr, M_pad)

    # torch .expand(N, T, time_num) -> after the Linear, all N entries are identical.
    # TODO(synk): fuse into the consumer and let it broadcast over N instead of
    # materializing (N, T, E) here.
    return jnp.broadcast_to(out_te[None, :, :], (N, T, embed_size))


def _reference_forward(i, I, W, b, N, T):
    time_num = I.shape[0]
    idx = (i % time_num + np.arange(T)) % time_num
    onehot = np.asarray(I)[idx]                               # (T, time_num)
    out = onehot @ np.asarray(W).T + np.asarray(b)            # (T, embed_size)
    return np.broadcast_to(out[None, :, :], (N, T, W.shape[0]))


if __name__ == "__main__":
    embed_size = 32
    time_num = 288
    N, T = 25, 12
    i = 283  # exercises the wraparound branch: 283 % 288 + 12 > 288

    # Deterministic parameter init (shapes from __init__).
    key = jax.random.PRNGKey(0)
    kW, kb = jax.random.split(key)
    I = jnp.eye(time_num, dtype=jnp.float32)                                  # nn.Parameter(eye)
    bound = 1.0 / np.sqrt(time_num)
    W = jax.random.uniform(kW, (embed_size, time_num), jnp.float32, -bound, bound)
    b = jax.random.uniform(kb, (embed_size,), jnp.float32, -bound, bound)

    out = one_hot_encoder_forward(i, I, W, b, N=N, T=T)
    out = jax.block_until_ready(out)

    ref = _reference_forward(i, I, W, b, N, T)
    assert out.shape == (N, T, embed_size), out.shape
    np.testing.assert_allclose(np.asarray(out), ref, rtol=1e-5, atol=1e-5)

    # Also check the no-wrap branch.
    i2 = 7
    out2 = jax.block_until_ready(one_hot_encoder_forward(i2, I, W, b, N=N, T=T))
    ref2 = _reference_forward(i2, I, W, b, N, T)
    np.testing.assert_allclose(np.asarray(out2), ref2, rtol=1e-5, atol=1e-5)

    print("KERNEL_OK")
</pallas_src>

<mosaic_0001>
module attributes {stable_mosaic.version = 11 : i64} {
  func.func @_one_hot_encoder_kernel(%arg0: i32, %arg1: memref<1xi32, #tpu.memory_space<smem>>, %arg2: memref<300x32xf32, #tpu.memory_space<any>>, %arg3: memref<12x32xf32, #tpu.memory_space<vmem>>, %arg4: memref<!tpu.dma_semaphore, #tpu.memory_space<semaphore_mem>>) attributes {dimension_semantics = [#tpu.dimension_semantics<arbitrary>], iteration_bounds = array<i64: 1>, scalar_prefetch = 1 : i64, scratch_operands = 1 : i64, tpu.core_type = #tpu.core_type<tc>, window_params = [{}, {pipeline_mode = #tpu.pipeline_mode<synchronous>, transform_indices = @transform_1, window_bounds = array<i64: 12, 32>}]} {
    %c0 = arith.constant 0 : index
    %0 = memref.load %arg1[%c0] : memref<1xi32, #tpu.memory_space<smem>>
    %c0_i32 = arith.constant 0 : i32
    %1 = tpu.memref_slice %arg2[%0, %c0_i32] : memref<300x32xf32, #tpu.memory_space<any>> -> memref<12x32xf32, #tpu.memory_space<any>>
    tpu.enqueue_dma source(%1 : memref<12x32xf32, #tpu.memory_space<any>>) target(%arg3 : memref<12x32xf32, #tpu.memory_space<vmem>>) target_semaphore(%arg4 : memref<!tpu.dma_semaphore, #tpu.memory_space<semaphore_mem>>)
    %c0_i32_0 = arith.constant 0 : i32
    %2 = tpu.memref_slice %arg2[%0, %c0_i32_0] : memref<300x32xf32, #tpu.memory_space<any>> -> memref<12x32xf32, #tpu.memory_space<any>>
    tpu.wait_dma2 semaphore(%arg4 : memref<!tpu.dma_semaphore, #tpu.memory_space<semaphore_mem>>) src(%2 : memref<12x32xf32, #tpu.memory_space<any>>) dst(%arg3 : memref<12x32xf32, #tpu.memory_space<vmem>>)
    return
  }
  func.func @transform_1(%arg0: i32, %arg1: memref<1xi32, #tpu.memory_space<smem>>) -> (i32, i32) {
    %c0_i32 = arith.constant 0 : i32
    %c0_i32_0 = arith.constant 0 : i32
    %c0_i32_1 = arith.constant 0 : i32
    return %c0_i32, %c0_i32_0 : i32, i32
  }
}

</mosaic_0001>

<llo_original>
// kernel: tpu_custom_call.1
$region0: #{tpu_custom_call.1}
  #allocation0 [shape = 'u32[]', space=smem, size = 0x4, offset = 0x4, fixed_abs, tag = 'smem constant byte address 0x4 - core index']
  #allocation1 [shape = 'u32[144,128]{1,0:T(1,128)}', space=vmem, size = 0x12000, scoped, tag = 'internal scratch']
  #allocation2 [shape = 's32[1]{0}', space=sflag, size = 0x4, scoped, tag = 'scratch operand']
  #allocation3 [shape = 's32[1]{0}', space=sflag, size = 0x4, scoped, tag = 'scoped memory for tpu_custom_call.1']
  #allocation4 [shape = 's32[1]{0:T(128)S(6)}', space=smem, size = 0x200, scoped, tag = 'prefetched SMEM operand 0']
  #allocation7 [shape = 's32[]', space=sflag, size = 0x4, offset = 0, fixed_abs, tag = 'sflag constant byte address 0x0 - dummy sync flag']
  %s0 = inlined_call_operand.<no memory space> [shape: s32[1], index: 0, kind: input, shape index: {}]
  %s1 = inlined_call_operand.vmem [shape: f32[300,32], index: 1, kind: input, shape index: {}]
  %s2 = inlined_call_operand.hbm [shape: f32[12,32], index: 2, kind: output, shape index: {}]
  %s3 = sld [smem:[#allocation0]]
  $region47: #{tpu_custom_call.1} parent=0
    _
  %s5 = ssub.s32 1, %s3
  %s6 = scalar_select 0, %s5, %s3
  %7 = sst [smem:[#allocation4]] %s0
  $region1: #{tpu_custom_call.1} parent=0
    #allocation5 [shape = 'u8[8192]{0}', space=vmem, size = 0x2000, scoped, tag = 'output window, operand 0, single buffered']
    #allocation6 [shape = 's32[1]{0}', space=sflag, size = 0x4, scoped, tag = 'scoped memory for tpu_custom_call.1']
    %8 = vsyncpa [#allocation6], 0
    %s9 = sld [smem:[#allocation4]]
    %s10 = scalar_lea.vmem %s1, %s9
    %p12 = scmp.lt.u32.totalorder 12, 8
    %p13 = pneg %p12
    // Predicated region
    $region2: #{tpu_custom_call.1} parent=1 // pred_check
      _
    $region3: #{tpu_custom_call.1} parent=1 // pred_check_branch
      %15 = sbr.rel (%p12) target = $region5
    $region4: #{tpu_custom_call.1} parent=1 // pred_region
      %s30 = sand.u32 12, 7
      %p31 = scmp.eq.s32.totalorder %s30, 0
      %p32 = pneg %p31
      // Predicated region
      $region17: #{tpu_custom_call.1} parent=4 // pred_check
        _
      $region18: #{tpu_custom_call.1} parent=4 // pred_check_branch
        %34 = sbr.rel (%p31) target = $region20
      $region19: #{tpu_custom_call.1} parent=4 // pred_region
        %s35 = sand.u32 12, 7
        %s36 = ssub.s32 12, %s35
        %s37 = scalar_lea.vmem %s10, %s36
        %s38 = ssub.s32 12, %s35
        %s39 = scalar_lea.vmem [#allocation5], %s38
        loop: start=0, step=1, limit=1
        $region21: #{tpu_custom_call.1} parent=19 // loop_pre_header
          _
        $region22: #{tpu_custom_call.1} parent=19 // loop_header
          %s41 = sphi 0, %s45
          %p42 = scmp.ge.s32.totalorder %s41, 1
          %s46 = sphi %s10, %s10
          %s47 = sphi [#allocation5], [#allocation5]
        $region23: #{tpu_custom_call.1} parent=19 // loop_header_branch
          %44 = sbr.rel (%p42) target = $region27
        $region24: #{tpu_custom_call.1} parent=19 // loop_body
          %v48 = vld [vmem:[%s46] sm:$0xff]
          %49 = vst [vmem:[%s47] sm:$0xff] %v48
        $region25: #{tpu_custom_call.1} parent=19 // loop_footer
          %s45 = sadd.s32 1, %s41
        $region26: #{tpu_custom_call.1} parent=19 // loop_footer_branch
          %40 = sbr.rel target = $region22
        $region27: #{tpu_custom_call.1} parent=19 // loop_exit
          _
        %s50 = sshllo.u32 0, %s35
        loop: start=0, step=1, limit=1
        $region28: #{tpu_custom_call.1} parent=19 // loop_pre_header
          _
        $region29: #{tpu_custom_call.1} parent=19 // loop_header
          %s52 = sphi 0, %s56
          %p53 = scmp.ge.s32.totalorder %s52, 1
          %s57 = sphi %s37, %s37
          %s58 = sphi %s39, %s39
        $region30: #{tpu_custom_call.1} parent=19 // loop_header_branch
          %55 = sbr.rel (%p53) target = $region34
        $region31: #{tpu_custom_call.1} parent=19 // loop_body
          %v59 = vld [vmem:[%s57] sm:%s50]
          %60 = vst [vmem:[%s58] sm:%s50] %v59
        $region32: #{tpu_custom_call.1} parent=19 // loop_footer
          %s56 = sadd.s32 1, %s52
        $region33: #{tpu_custom_call.1} parent=19 // loop_footer_branch
          %51 = sbr.rel target = $region29
        $region34: #{tpu_custom_call.1} parent=19 // loop_exit
          _
      $region20: #{tpu_custom_call.1} parent=4 // pred_fallthru
        _
    $region5: #{tpu_custom_call.1} parent=1 // pred_fallthru
      _
    // Predicated region
    $region6: #{tpu_custom_call.1} parent=1 // pred_check
      %p16 = pneg %p12
    $region7: #{tpu_custom_call.1} parent=1 // pred_check_branch
      %18 = sbr.rel (%p16) target = $region9
    $region8: #{tpu_custom_call.1} parent=1 // pred_region
      %s19 = sshllo.u32 0, 12
      loop: start=0, step=1, limit=1
      $region10: #{tpu_custom_call.1} parent=8 // loop_pre_header
        _
      $region11: #{tpu_custom_call.1} parent=8 // loop_header
        %s21 = sphi 0, %s25
        %p22 = scmp.ge.s32.totalorder %s21, 1
        %s26 = sphi %s10, %s10
        %s27 = sphi [#allocation5], [#allocation5]
      $region12: #{tpu_custom_call.1} parent=8 // loop_header_branch
        %24 = sbr.rel (%p22) target = $region16
      $region13: #{tpu_custom_call.1} parent=8 // loop_body
        %v28 = vld [vmem:[%s26] sm:%s19]
        %29 = vst [vmem:[%s27] sm:%s19] %v28
      $region14: #{tpu_custom_call.1} parent=8 // loop_footer
        %s25 = sadd.s32 1, %s21
      $region15: #{tpu_custom_call.1} parent=8 // loop_footer_branch
        %20 = sbr.rel target = $region11
      $region16: #{tpu_custom_call.1} parent=8 // loop_exit
        _
    $region9: #{tpu_custom_call.1} parent=1 // pred_fallthru
      _
    // Predicated region
    $region35: #{tpu_custom_call.1} parent=1 // pred_check
      _
    $region36: #{tpu_custom_call.1} parent=1 // pred_check_branch
      %63 = sbr.rel (0) target = $region38
    $region37: #{tpu_custom_call.1} parent=1 // pred_region
      %64 = vsyncadd [#allocation2], 192
    $region38: #{tpu_custom_call.1} parent=1 // pred_fallthru
      _
    %s65 = smul.u32 12, 1
    %s66 = sshll.u32 %s65, 4
    %67 = dma.done [#allocation2], %s66
    // Predicated region
    $region39: #{tpu_custom_call.1} parent=1 // pred_check
      _
    $region40: #{tpu_custom_call.1} parent=1 // pred_check_branch
      %69 = sbr.rel (0) target = $region42
    $region41: #{tpu_custom_call.1} parent=1 // pred_region
      %s71 = ssub.s32 256, 256
      %72 = vsyncadd [#allocation6], %s71
      %s73 = sshll.u32 [#allocation5], 4
      %s74 = int_to_ptr.vmem [resolvable:$true] %s73
      %79 = dma.vmem_to_hbm [thread:$0]  %s74, 256, %s2, [#allocation6], 128, 128, 8
    $region42: #{tpu_custom_call.1} parent=1 // pred_fallthru
      _
    // Predicated region
    $region43: #{tpu_custom_call.1} parent=1 // pred_check
      _
    $region44: #{tpu_custom_call.1} parent=1 // pred_check_branch
      %81 = sbr.rel (0) target = $region46
    $region45: #{tpu_custom_call.1} parent=1 // pred_region
      %82 = dma.done [#allocation6], 256
    $region46: #{tpu_custom_call.1} parent=1 // pred_fallthru
      _
    %83 = vsyncpa [#allocation6], 1
  %84 = vsyncmov [#allocation2]
  %s85 = vpop.sfrf %84
  %p86 = scmp.eq.s32.totalorder %s85, 0
  %p87 = pneg %p86
  %89 = shalt.err (%p87)

</llo_original>
